<compile_context>
chip_gen: v7x
topology: tpu7x:2x2x1
jax: 0.10.0
libtpu: 0.0.40
codegen_flags: <defaults>
</compile_context>

<pallas_src>
from functools import partial

import jax
import jax.numpy as jnp
from jax.experimental import pallas as pl
from jax.experimental.pallas import tpu as pltpu

BN_EPS = 1e-5


def _round_up(n, m=128):
    return ((n + m - 1) // m) * m


def _fused_layer(h, w_ref, gb_ref, inv_b, row_mask):
    """Linear (no bias) -> BatchNorm1d (batch stats) -> ReLU, all in VMEM.

    h        : (B_pad, F_in) activation (f32 or bf16)
    w_ref    : (F_in, F_out) weight Ref (f32 or bf16)
    gb_ref   : (2, F_out) f32 Ref; row 0 = gamma, row 1 = beta
    inv_b    : 1 / real_batch_size (padded rows contribute exactly 0)
    row_mask : (B_pad, 1) bool or None; zeroes padded rows after ReLU
    """
    w = w_ref[...]
    # MXU matmul; accumulate in f32 regardless of operand dtype.
    y = jnp.dot(h.astype(w.dtype), w, preferred_element_type=jnp.float32)   # (Bp, F)
    f = y.shape[1]

    # One cross-sublane (XLU) reduction over the lane-concatenated [y | y*y]
    # block instead of two separate axis-0 sums.
    yy = jnp.concatenate([y, y * y], axis=1)                                # (Bp, 2F)
    sums = jnp.sum(yy, axis=0, keepdims=True) * inv_b                       # (1, 2F)
    mean = sums[:, :f]                                                      # (1, F)
    # Clamp: E[y^2] - mean^2 can go slightly negative (cancellation, bf16 path).
    var = jnp.maximum(sums[:, f:] - mean * mean, 0.0)                       # (1, F)

    gamma = gb_ref[0:1, :]                                                  # (1, F)
    beta = gb_ref[1:2, :]                                                   # (1, F)
    s = gamma * jax.lax.rsqrt(var + BN_EPS)                                 # (1, F)
    t = beta - mean * s                                                     # (1, F)

    h_out = jnp.maximum(y * s + t, 0.0)                                     # (Bp, F) f32
    if row_mask is not None:
        # Keep padded batch rows exactly zero so they contribute nothing to
        # the next layer's batch statistics.
        h_out = jnp.where(row_mask, h_out, 0.0)
    return h_out


def make_generator_kernel(b_real, b_pad):
    inv_b = 1.0 / b_real
    need_mask = b_pad != b_real

    def kernel(x_ref, w1_ref, gb1_ref, w2_ref, gb2_ref, w3_ref, gb3_ref, out_ref):
        if need_mask:
            rows = jax.lax.broadcasted_iota(jnp.int32, (b_pad, 1), 0)
            row_mask = rows < b_real
        else:
            row_mask = None
        h = _fused_layer(x_ref[...], w1_ref, gb1_ref, inv_b, row_mask)
        h = _fused_layer(h, w2_ref, gb2_ref, inv_b, row_mask)
        # Last layer: padded rows are sliced off in the wrapper; no mask needed.
        h = _fused_layer(h, w3_ref, gb3_ref, inv_b, None)
        out_ref[...] = h.astype(out_ref.dtype)

    return kernel


def pack_generator_params(params, use_bf16=True):
    """One-time pad / pack / cast of Generator params for the kernel.

    Runs once (outside the hot path). Linear biases are intentionally dropped:
    with training-mode BatchNorm a per-feature constant shift is exactly
    cancelled by the batch-mean subtraction (the pure-JAX reference below
    applies the bias and matches). Feature dims are zero-padded to multiples
    of 128 so all matmuls / stores are lane-dense; gamma/beta are packed into
    a single (2, F_pad) array per layer.
    """
    mm_dtype = jnp.bfloat16 if use_bf16 else jnp.float32
    z_dim = params[0].shape[0]
    prev_pad = _round_up(z_dim)
    packed = []
    for i in range(3):
        w, _b, gamma, beta = params[4 * i:4 * i + 4]
        fin, fout = w.shape
        fout_pad = _round_up(fout)
        w_p = jnp.pad(w, ((0, prev_pad - fin), (0, fout_pad - fout))).astype(mm_dtype)
        gb = jnp.stack(
            [jnp.pad(gamma.reshape(-1), (0, fout_pad - fout)),
             jnp.pad(beta.reshape(-1), (0, fout_pad - fout))],
            axis=0).astype(jnp.float32)                                      # (2, fout_pad)
        packed += [w_p, gb]
        prev_pad = fout_pad
    return tuple(packed)


@partial(jax.jit, static_argnames=("n_features",))
def generator_forward(x, packed, *, n_features):
    """x: (B, z_dim) f32.  packed: output of pack_generator_params."""
    w1, gb1, w2, gb2, w3, gb3 = packed
    B, z = x.shape
    mm_dtype = w1.dtype
    z_pad = w1.shape[0]
    out_pad = w3.shape[1]

    # Full (16,128) packed-vreg occupancy for bf16 operands; (8,128) for f32.
    b_mult = 16 if mm_dtype == jnp.bfloat16 else 8
    b_pad = _round_up(B, b_mult)
    x_p = jnp.pad(x, ((0, b_pad - B), (0, z_pad - z))).astype(mm_dtype)

    vmem = pl.BlockSpec(memory_space=pltpu.MemorySpace.VMEM)
    out = pl.pallas_call(
        make_generator_kernel(B, b_pad),
        out_shape=jax.ShapeDtypeStruct((b_pad, out_pad), jnp.float32),
        in_specs=[vmem] * 7,
        out_specs=vmem,
    )(x_p, w1, gb1, w2, gb2, w3, gb3)

    # Toy-size convenience slice back to the logical shape. For production,
    # keep the lane-padded layout for the downstream consumer instead.
    return out[:B, :n_features]


def init_generator_params(key, z_dim, min_hidden_size, n_features):
    """Deterministic synthetic init matching the PyTorch module's shapes."""
    dims = [(z_dim, min_hidden_size),
            (min_hidden_size, min_hidden_size * 2),
            (min_hidden_size * 2, n_features)]
    params = []
    for i, (fin, fout) in enumerate(dims):
        kw, kb = jax.random.split(jax.random.fold_in(key, i))
        bound = 1.0 / jnp.sqrt(fin)
        w = jax.random.uniform(kw, (fin, fout), jnp.float32, -bound, bound)
        b = jax.random.uniform(kb, (1, fout), jnp.float32, -bound, bound)
        gamma = jnp.ones((1, fout), jnp.float32)    # BN weight init = 1
        beta = jnp.zeros((1, fout), jnp.float32)    # BN bias init = 0
        params += [w, b, gamma, beta]
    return tuple(params)


def generator_reference(x, params):
    """Pure-JAX reference with full PyTorch semantics (including Linear bias)."""
    h = x
    for i in range(3):
        w, b, gamma, beta = params[4 * i:4 * i + 4]
        y = h @ w + b
        mean = jnp.mean(y, axis=0, keepdims=True)
        var = jnp.mean((y - mean) ** 2, axis=0, keepdims=True)
        h = jnp.maximum((y - mean) / jnp.sqrt(var + BN_EPS) * gamma + beta, 0.0)
    return h


if __name__ == "__main__":
    key = jax.random.PRNGKey(0)
    B, z_dim, min_hidden_size, n_features = 8, 32, 32, 16

    k_x, k_p = jax.random.split(key)
    x = jax.random.normal(k_x, (B, z_dim), jnp.float32)
    params = init_generator_params(k_p, z_dim, min_hidden_size, n_features)

    ref = generator_reference(x, params)

    # Default path: bf16 MXU operands on all generations (v5e/v6e/v7x),
    # f32 accumulation + f32 BN/ReLU math. Params packed/cast exactly once.
    packed_bf16 = pack_generator_params(params, use_bf16=True)
    out_bf16 = generator_forward(x, packed_bf16, n_features=n_features)
    jax.block_until_ready(out_bf16)
    assert out_bf16.shape == (B, n_features)
    assert jnp.allclose(out_bf16, ref, atol=1e-1, rtol=1e-1), "bf16 kernel mismatch vs reference"

    # Optional full-f32 path (tight tolerance check of the fused math).
    packed_f32 = pack_generator_params(params, use_bf16=False)
    out_f32 = generator_forward(x, packed_f32, n_features=n_features)
    jax.block_until_ready(out_f32)
    assert out_f32.shape == (B, n_features)
    assert jnp.allclose(out_f32, ref, atol=1e-3, rtol=1e-3), "f32 kernel mismatch vs reference"

    print("KERNEL_OK")
</pallas_src>

<mosaic_0001>
module attributes {stable_mosaic.version = 11 : i64} {
  func.func @kernel(%arg0: memref<16x128xbf16, #tpu.memory_space<vmem>>, %arg1: memref<128x128xbf16, #tpu.memory_space<vmem>>, %arg2: memref<2x128xf32, #tpu.memory_space<vmem>>, %arg3: memref<128x128xbf16, #tpu.memory_space<vmem>>, %arg4: memref<2x128xf32, #tpu.memory_space<vmem>>, %arg5: memref<128x128xbf16, #tpu.memory_space<vmem>>, %arg6: memref<2x128xf32, #tpu.memory_space<vmem>>, %arg7: memref<16x128xf32, #tpu.memory_space<vmem>>) attributes {dimension_semantics = [], scalar_prefetch = 0 : i64, scratch_operands = 0 : i64, tpu.core_type = #tpu.core_type<tc>} {
    %0 = tpu.iota {dimensions = array<i32: 0>} : vector<16x1xi32>
    %c8_i32 = arith.constant 8 : i32
    %1 = vector.broadcast %c8_i32 : i32 to vector<16x1xi32>
    %2 = arith.cmpi slt, %0, %1 : vector<16x1xi32>
    %c0 = arith.constant 0 : index
    %c0_0 = arith.constant 0 : index
    %3 = vector.load %arg0[%c0, %c0_0] : memref<16x128xbf16, #tpu.memory_space<vmem>>, vector<16x128xbf16>
    %c0_1 = arith.constant 0 : index
    %c0_2 = arith.constant 0 : index
    %4 = vector.load %arg1[%c0_1, %c0_2] : memref<128x128xbf16, #tpu.memory_space<vmem>>, vector<128x128xbf16>
    %cst = arith.constant dense<0.000000e+00> : vector<16x128xf32>
    %5 = tpu.matmul %3, %4, %cst {dimension_numbers = #tpu.dot_dimension_numbers<[1], [0], [0], [1], [0, 0, 1, 1], [], []>} : vector<16x128xbf16>, vector<128x128xbf16>, vector<16x128xf32> -> vector<16x128xf32>
    %6 = arith.mulf %5, %5 : vector<16x128xf32>
    %7 = tpu.concatenate %5, %6 in 1 : vector<16x128xf32>, vector<16x128xf32> -> vector<16x256xf32>
    %cst_3 = arith.constant dense<0.000000e+00> : vector<256xf32>
    %8 = vector.multi_reduction <add>, %7, %cst_3 [0] : vector<16x256xf32> to vector<256xf32>
    %9 = vector.shape_cast %8 : vector<256xf32> to vector<1x256xf32>
    %cst_4 = arith.constant 1.250000e-01 : f32
    %10 = vector.broadcast %cst_4 : f32 to vector<1x256xf32>
    %11 = arith.mulf %9, %10 : vector<1x256xf32>
    %12 = vector.extract_strided_slice %11 {offsets = [0, 0], sizes = [1, 128], strides = [1, 1]} : vector<1x256xf32> to vector<1x128xf32>
    %13 = vector.extract_strided_slice %11 {offsets = [0, 128], sizes = [1, 128], strides = [1, 1]} : vector<1x256xf32> to vector<1x128xf32>
    %14 = arith.mulf %12, %12 : vector<1x128xf32>
    %15 = arith.subf %13, %14 : vector<1x128xf32>
    %cst_5 = arith.constant 0.000000e+00 : f32
    %16 = vector.broadcast %cst_5 : f32 to vector<1x128xf32>
    %17 = arith.maximumf %15, %16 : vector<1x128xf32>
    %c0_6 = arith.constant 0 : index
    %c0_7 = arith.constant 0 : index
    %18 = vector.load %arg2[%c0_6, %c0_7] : memref<2x128xf32, #tpu.memory_space<vmem>>, vector<1x128xf32>
    %c1 = arith.constant 1 : index
    %c0_8 = arith.constant 0 : index
    %19 = vector.load %arg2[%c1, %c0_8] : memref<2x128xf32, #tpu.memory_space<vmem>>, vector<1x128xf32>
    %cst_9 = arith.constant 9.99999974E-6 : f32
    %20 = vector.broadcast %cst_9 : f32 to vector<1x128xf32>
    %21 = arith.addf %17, %20 : vector<1x128xf32>
    %22 = math.rsqrt %21 : vector<1x128xf32>
    %23 = arith.mulf %18, %22 : vector<1x128xf32>
    %24 = arith.mulf %12, %23 : vector<1x128xf32>
    %25 = arith.subf %19, %24 : vector<1x128xf32>
    %26 = vector.broadcast %23 : vector<1x128xf32> to vector<16x128xf32>
    %27 = arith.mulf %5, %26 : vector<16x128xf32>
    %28 = vector.broadcast %25 : vector<1x128xf32> to vector<16x128xf32>
    %29 = arith.addf %27, %28 : vector<16x128xf32>
    %cst_10 = arith.constant 0.000000e+00 : f32
    %30 = vector.broadcast %cst_10 : f32 to vector<16x128xf32>
    %31 = arith.maximumf %29, %30 : vector<16x128xf32>
    %cst_11 = arith.constant 0.000000e+00 : f32
    %32 = vector.shape_cast %2 : vector<16x1xi1> to vector<16x1xi1>
    %33 = vector.broadcast %32 : vector<16x1xi1> to vector<16x128xi1>
    %34 = vector.broadcast %cst_11 : f32 to vector<16x128xf32>
    %35 = arith.select %33, %31, %34 : vector<16x128xi1>, vector<16x128xf32>
    %c0_12 = arith.constant 0 : index
    %c0_13 = arith.constant 0 : index
    %36 = vector.load %arg3[%c0_12, %c0_13] : memref<128x128xbf16, #tpu.memory_space<vmem>>, vector<128x128xbf16>
    %37 = arith.truncf %35 : vector<16x128xf32> to vector<16x128xbf16>
    %cst_14 = arith.constant dense<0.000000e+00> : vector<16x128xf32>
    %38 = tpu.matmul %37, %36, %cst_14 {dimension_numbers = #tpu.dot_dimension_numbers<[1], [0], [0], [1], [0, 0, 1, 1], [], []>} : vector<16x128xbf16>, vector<128x128xbf16>, vector<16x128xf32> -> vector<16x128xf32>
    %39 = arith.mulf %38, %38 : vector<16x128xf32>
    %40 = tpu.concatenate %38, %39 in 1 : vector<16x128xf32>, vector<16x128xf32> -> vector<16x256xf32>
    %cst_15 = arith.constant dense<0.000000e+00> : vector<256xf32>
    %41 = vector.multi_reduction <add>, %40, %cst_15 [0] : vector<16x256xf32> to vector<256xf32>
    %42 = vector.shape_cast %41 : vector<256xf32> to vector<1x256xf32>
    %cst_16 = arith.constant 1.250000e-01 : f32
    %43 = vector.broadcast %cst_16 : f32 to vector<1x256xf32>
    %44 = arith.mulf %42, %43 : vector<1x256xf32>
    %45 = vector.extract_strided_slice %44 {offsets = [0, 0], sizes = [1, 128], strides = [1, 1]} : vector<1x256xf32> to vector<1x128xf32>
    %46 = vector.extract_strided_slice %44 {offsets = [0, 128], sizes = [1, 128], strides = [1, 1]} : vector<1x256xf32> to vector<1x128xf32>
    %47 = arith.mulf %45, %45 : vector<1x128xf32>
    %48 = arith.subf %46, %47 : vector<1x128xf32>
    %cst_17 = arith.constant 0.000000e+00 : f32
    %49 = vector.broadcast %cst_17 : f32 to vector<1x128xf32>
    %50 = arith.maximumf %48, %49 : vector<1x128xf32>
    %c0_18 = arith.constant 0 : index
    %c0_19 = arith.constant 0 : index
    %51 = vector.load %arg4[%c0_18, %c0_19] : memref<2x128xf32, #tpu.memory_space<vmem>>, vector<1x128xf32>
    %c1_20 = arith.constant 1 : index
    %c0_21 = arith.constant 0 : index
    %52 = vector.load %arg4[%c1_20, %c0_21] : memref<2x128xf32, #tpu.memory_space<vmem>>, vector<1x128xf32>
    %cst_22 = arith.constant 9.99999974E-6 : f32
    %53 = vector.broadcast %cst_22 : f32 to vector<1x128xf32>
    %54 = arith.addf %50, %53 : vector<1x128xf32>
    %55 = math.rsqrt %54 : vector<1x128xf32>
    %56 = arith.mulf %51, %55 : vector<1x128xf32>
    %57 = arith.mulf %45, %56 : vector<1x128xf32>
    %58 = arith.subf %52, %57 : vector<1x128xf32>
    %59 = vector.broadcast %56 : vector<1x128xf32> to vector<16x128xf32>
    %60 = arith.mulf %38, %59 : vector<16x128xf32>
    %61 = vector.broadcast %58 : vector<1x128xf32> to vector<16x128xf32>
    %62 = arith.addf %60, %61 : vector<16x128xf32>
    %cst_23 = arith.constant 0.000000e+00 : f32
    %63 = vector.broadcast %cst_23 : f32 to vector<16x128xf32>
    %64 = arith.maximumf %62, %63 : vector<16x128xf32>
    %cst_24 = arith.constant 0.000000e+00 : f32
    %65 = vector.shape_cast %2 : vector<16x1xi1> to vector<16x1xi1>
    %66 = vector.broadcast %65 : vector<16x1xi1> to vector<16x128xi1>
    %67 = vector.broadcast %cst_24 : f32 to vector<16x128xf32>
    %68 = arith.select %66, %64, %67 : vector<16x128xi1>, vector<16x128xf32>
    %c0_25 = arith.constant 0 : index
    %c0_26 = arith.constant 0 : index
    %69 = vector.load %arg5[%c0_25, %c0_26] : memref<128x128xbf16, #tpu.memory_space<vmem>>, vector<128x128xbf16>
    %70 = arith.truncf %68 : vector<16x128xf32> to vector<16x128xbf16>
    %cst_27 = arith.constant dense<0.000000e+00> : vector<16x128xf32>
    %71 = tpu.matmul %70, %69, %cst_27 {dimension_numbers = #tpu.dot_dimension_numbers<[1], [0], [0], [1], [0, 0, 1, 1], [], []>} : vector<16x128xbf16>, vector<128x128xbf16>, vector<16x128xf32> -> vector<16x128xf32>
    %72 = arith.mulf %71, %71 : vector<16x128xf32>
    %73 = tpu.concatenate %71, %72 in 1 : vector<16x128xf32>, vector<16x128xf32> -> vector<16x256xf32>
    %cst_28 = arith.constant dense<0.000000e+00> : vector<256xf32>
    %74 = vector.multi_reduction <add>, %73, %cst_28 [0] : vector<16x256xf32> to vector<256xf32>
    %75 = vector.shape_cast %74 : vector<256xf32> to vector<1x256xf32>
    %cst_29 = arith.constant 1.250000e-01 : f32
    %76 = vector.broadcast %cst_29 : f32 to vector<1x256xf32>
    %77 = arith.mulf %75, %76 : vector<1x256xf32>
    %78 = vector.extract_strided_slice %77 {offsets = [0, 0], sizes = [1, 128], strides = [1, 1]} : vector<1x256xf32> to vector<1x128xf32>
    %79 = vector.extract_strided_slice %77 {offsets = [0, 128], sizes = [1, 128], strides = [1, 1]} : vector<1x256xf32> to vector<1x128xf32>
    %80 = arith.mulf %78, %78 : vector<1x128xf32>
    %81 = arith.subf %79, %80 : vector<1x128xf32>
    %cst_30 = arith.constant 0.000000e+00 : f32
    %82 = vector.broadcast %cst_30 : f32 to vector<1x128xf32>
    %83 = arith.maximumf %81, %82 : vector<1x128xf32>
    %c0_31 = arith.constant 0 : index
    %c0_32 = arith.constant 0 : index
    %84 = vector.load %arg6[%c0_31, %c0_32] : memref<2x128xf32, #tpu.memory_space<vmem>>, vector<1x128xf32>
    %c1_33 = arith.constant 1 : index
    %c0_34 = arith.constant 0 : index
    %85 = vector.load %arg6[%c1_33, %c0_34] : memref<2x128xf32, #tpu.memory_space<vmem>>, vector<1x128xf32>
    %cst_35 = arith.constant 9.99999974E-6 : f32
    %86 = vector.broadcast %cst_35 : f32 to vector<1x128xf32>
    %87 = arith.addf %83, %86 : vector<1x128xf32>
    %88 = math.rsqrt %87 : vector<1x128xf32>
    %89 = arith.mulf %84, %88 : vector<1x128xf32>
    %90 = arith.mulf %78, %89 : vector<1x128xf32>
    %91 = arith.subf %85, %90 : vector<1x128xf32>
    %92 = vector.broadcast %89 : vector<1x128xf32> to vector<16x128xf32>
    %93 = arith.mulf %71, %92 : vector<16x128xf32>
    %94 = vector.broadcast %91 : vector<1x128xf32> to vector<16x128xf32>
    %95 = arith.addf %93, %94 : vector<16x128xf32>
    %cst_36 = arith.constant 0.000000e+00 : f32
    %96 = vector.broadcast %cst_36 : f32 to vector<16x128xf32>
    %97 = arith.maximumf %95, %96 : vector<16x128xf32>
    %c0_37 = arith.constant 0 : index
    %c0_38 = arith.constant 0 : index
    %98 = vector.load %arg7[%c0_37, %c0_38] : memref<16x128xf32, #tpu.memory_space<vmem>>, vector<16x128xf32>
    tpu.vector_store %arg7[%c0_37, %c0_38], %97 {strides = array<i32>} : memref<16x128xf32, #tpu.memory_space<vmem>>, vector<16x128xf32>,
    return
  }
}

</mosaic_0001>

<llo_original>
// kernel: generator_forward.1
$region0: #{generator_forward.1}
  #allocation0 [shape = 'u32[]', space=smem, size = 0x4, offset = 0x4, fixed_abs, tag = 'smem constant byte address 0x4 - core index']
  #allocation1 [shape = 'u32[144,128]{1,0:T(1,128)}', space=vmem, size = 0x12000, scoped, tag = 'internal scratch']
  %s0 = inlined_call_operand.vmem [shape: bf16[16,128], index: 0, kind: input, shape index: {}]
  %s1 = inlined_call_operand.hbm [shape: bf16[128,128], index: 1, kind: input, shape index: {}]
  %s2 = inlined_call_operand.vmem [shape: f32[2,128], index: 2, kind: input, shape index: {}]
  %s3 = inlined_call_operand.hbm [shape: bf16[128,128], index: 3, kind: input, shape index: {}]
  %s4 = inlined_call_operand.vmem [shape: f32[2,128], index: 4, kind: input, shape index: {}]
  %s5 = inlined_call_operand.hbm [shape: bf16[128,128], index: 5, kind: input, shape index: {}]
  %s6 = inlined_call_operand.vmem [shape: f32[2,128], index: 6, kind: input, shape index: {}]
  %s7 = inlined_call_operand.vmem [shape: f32[16,128], index: 7, kind: output, shape index: {}]
  %s8 = sld [smem:[#allocation0]]
  $region50: #{generator_forward.1} parent=0
    _
  %s10 = ssub.s32 1, %s8
  %s11 = scalar_select 0, %s10, %s8
  $region1: #{generator_forward.1} parent=0
    #allocation2 [shape = 'u8[32768]{0}', space=vmem, size = 0x8000, scoped, tag = 'input window, operand 1, single buffered']
    #allocation3 [shape = 's32[1]{0}', space=sflag, size = 0x4, scoped, tag = 'scoped memory for generator_forward.1']
    #allocation4 [shape = 'u8[32768]{0}', space=vmem, size = 0x8000, scoped, tag = 'input window, operand 3, single buffered']
    #allocation5 [shape = 's32[1]{0}', space=sflag, size = 0x4, scoped, tag = 'scoped memory for generator_forward.1']
    #allocation6 [shape = 'u8[32768]{0}', space=vmem, size = 0x8000, scoped, tag = 'input window, operand 5, single buffered']
    %12 = vsyncpa [#allocation3], 0
    %13 = vsyncpa [#allocation5], 0
    // Predicated region
    $region2: #{generator_forward.1} parent=1 // pred_check
      _
    $region3: #{generator_forward.1} parent=1 // pred_check_branch
      %15 = sbr.rel (0) target = $region5
    $region4: #{generator_forward.1} parent=1 // pred_region
      _
    $region5: #{generator_forward.1} parent=1 // pred_fallthru
      _
    // Predicated region
    $region6: #{generator_forward.1} parent=1 // pred_check
      _
    $region7: #{generator_forward.1} parent=1 // pred_check_branch
      %17 = sbr.rel (0) target = $region9
    $region8: #{generator_forward.1} parent=1 // pred_region
      %s19 = ssub.s32 1024, 1024
      %20 = vsyncadd [#allocation3], %s19
      %s21 = sshll.u32 [#allocation2], 4
      %s22 = int_to_ptr.vmem [resolvable:$true] %s21
      %27 = dma.hbm_to_vmem [thread:$0]  %s1, 1024, %s22, [#allocation3], 64, 64, 4
    $region9: #{generator_forward.1} parent=1 // pred_fallthru
      _
    // Predicated region
    $region10: #{generator_forward.1} parent=1 // pred_check
      _
    $region11: #{generator_forward.1} parent=1 // pred_check_branch
      %29 = sbr.rel (0) target = $region13
    $region12: #{generator_forward.1} parent=1 // pred_region
      _
    $region13: #{generator_forward.1} parent=1 // pred_fallthru
      _
    // Predicated region
    $region14: #{generator_forward.1} parent=1 // pred_check
      _
    $region15: #{generator_forward.1} parent=1 // pred_check_branch
      %31 = sbr.rel (0) target = $region17
    $region16: #{generator_forward.1} parent=1 // pred_region
      %s33 = ssub.s32 1024, 1024
      %34 = vsyncadd [#allocation5], %s33
      %s35 = sshll.u32 [#allocation4], 4
      %s36 = int_to_ptr.vmem [resolvable:$true] %s35
      %41 = dma.hbm_to_vmem [thread:$0]  %s3, 1024, %s36, [#allocation5], 64, 64, 4
    $region17: #{generator_forward.1} parent=1 // pred_fallthru
      _
    // Predicated region
    $region18: #{generator_forward.1} parent=1 // pred_check
      _
    $region19: #{generator_forward.1} parent=1 // pred_check_branch
      %43 = sbr.rel (0) target = $region21
    $region20: #{generator_forward.1} parent=1 // pred_region
      _
    $region21: #{generator_forward.1} parent=1 // pred_fallthru
      _
    // Predicated region
    $region22: #{generator_forward.1} parent=1 // pred_check
      _
    $region23: #{generator_forward.1} parent=1 // pred_check_branch
      %45 = sbr.rel (0) target = $region25
    $region24: #{generator_forward.1} parent=1 // pred_region
      %s47 = ssub.s32 1024, 1024
      %48 = vsyncadd [#allocation5], %s47
      %s49 = sshll.u32 [#allocation6], 4
      %s50 = int_to_ptr.vmem [resolvable:$true] %s49
      %55 = dma.hbm_to_vmem [thread:$0]  %s5, 1024, %s50, [#allocation5], 64, 64, 4
    $region25: #{generator_forward.1} parent=1 // pred_fallthru
      _
    // Predicated region
    $region26: #{generator_forward.1} parent=1 // pred_check
      _
    $region27: #{generator_forward.1} parent=1 // pred_check_branch
      %57 = sbr.rel (0) target = $region29
    $region28: #{generator_forward.1} parent=1 // pred_region
      _
    $region29: #{generator_forward.1} parent=1 // pred_fallthru
      _
    // Predicated region
    $region30: #{generator_forward.1} parent=1 // pred_check
      _
    $region31: #{generator_forward.1} parent=1 // pred_check_branch
      %59 = sbr.rel (0) target = $region33
    $region32: #{generator_forward.1} parent=1 // pred_region
      %60 = dma.done [#allocation3], 1024
    $region33: #{generator_forward.1} parent=1 // pred_fallthru
      _
    // Predicated region
    $region34: #{generator_forward.1} parent=1 // pred_check
      _
    $region35: #{generator_forward.1} parent=1 // pred_check_branch
      %62 = sbr.rel (0) target = $region37
    $region36: #{generator_forward.1} parent=1 // pred_region
      %63 = dma.done [#allocation5], 1024
    $region37: #{generator_forward.1} parent=1 // pred_fallthru
      _
    // Predicated region
    $region38: #{generator_forward.1} parent=1 // pred_check
      _
    $region39: #{generator_forward.1} parent=1 // pred_check_branch
      %65 = sbr.rel (0) target = $region41
    $region40: #{generator_forward.1} parent=1 // pred_region
      %66 = dma.done [#allocation5], 1024
    $region41: #{generator_forward.1} parent=1 // pred_fallthru
      _
    %v68 = vlaneseq
    %v69 = vshrl.u32 %v68, 7
    %v70 = vadd.s32 %v69, 8
    %vm71 = vcmp.lt.s32.totalorder %v69, 8
    %vm72 = vcmp.lt.s32.totalorder %v70, 8
    %v73 = vld [vmem:[%s0] sm:$0xf]
    %v74 = vld [vmem:[%s0 + $0x4] sm:$0xf]
    %v75 = vld [vmem:[#allocation2] sm:$0xf]
    %v76 = vld [vmem:[#allocation2 + $0x4] sm:$0xf]
    %v77 = vld [vmem:[#allocation2 + $0x8] sm:$0xf]
    %v78 = vld [vmem:[#allocation2 + $0xc] sm:$0xf]
    %v79 = vld [vmem:[#allocation2 + $0x10] sm:$0xf]
    %v80 = vld [vmem:[#allocation2 + $0x14] sm:$0xf]
    %v81 = vld [vmem:[#allocation2 + $0x18] sm:$0xf]
    %v82 = vld [vmem:[#allocation2 + $0x1c] sm:$0xf]
    %v83 = vld [vmem:[#allocation2 + $0x20] sm:$0xf]
    %v84 = vld [vmem:[#allocation2 + $0x24] sm:$0xf]
    %v85 = vld [vmem:[#allocation2 + $0x28] sm:$0xf]
    %v86 = vld [vmem:[#allocation2 + $0x2c] sm:$0xf]
    %v87 = vld [vmem:[#allocation2 + $0x30] sm:$0xf]
    %v88 = vld [vmem:[#allocation2 + $0x34] sm:$0xf]
    %v89 = vld [vmem:[#allocation2 + $0x38] sm:$0xf]
    %v90 = vld [vmem:[#allocation2 + $0x3c] sm:$0xf]
    %v93 = vunpack.c.l.b16 %v73
    %v94 = vunpack.c.l.b16 %v74
    %v95 = vpack.c.b16 %v94, %v93
    %v113 = vunpack.c.l.b16 %v75
    %v114 = vunpack.c.l.b16 %v76
    %v115 = vunpack.c.l.b16 %v77
    %v116 = vunpack.c.l.b16 %v78
    %v117 = vunpack.c.l.b16 %v79
    %v118 = vunpack.c.l.b16 %v80
    %v119 = vunpack.c.l.b16 %v81
    %v120 = vunpack.c.l.b16 %v82
    %v121 = vunpack.c.l.b16 %v83
    %v122 = vunpack.c.l.b16 %v84
    %v123 = vunpack.c.l.b16 %v85
    %v124 = vunpack.c.l.b16 %v86
    %v125 = vunpack.c.l.b16 %v87
    %v126 = vunpack.c.l.b16 %v88
    %v127 = vunpack.c.l.b16 %v89
    %v128 = vunpack.c.l.b16 %v90
    %v129 = vpack.c.b16 %v114, %v113
    %v130 = vpack.c.b16 %v116, %v115
    %v131 = vpack.c.b16 %v118, %v117
    %v132 = vpack.c.b16 %v120, %v119
    %v133 = vpack.c.b16 %v122, %v121
    %v134 = vpack.c.b16 %v124, %v123
    %v135 = vpack.c.b16 %v126, %v125
    %v136 = vpack.c.b16 %v128, %v127
    %145 = vmatprep.subr.bf16.mxu0 0
    %146 = vmatpush1.bf16.msra.mxu0 %v129
    %147 = vmatprep.subr.bf16.mxu0 0
    %148 = vmatpush1.bf16.msra.mxu0 %v130
    %149 = vmatprep.subr.bf16.mxu0 0
    %150 = vmatpush1.bf16.msra.mxu0 %v131
    %151 = vmatprep.subr.bf16.mxu0 0
    %152 = vmatpush1.bf16.msra.mxu0 %v132
    %153 = vmatprep.subr.bf16.mxu0 0
    %154 = vmatpush1.bf16.msra.mxu0 %v133
    %155 = vmatprep.subr.bf16.mxu0 0
    %156 = vmatpush1.bf16.msra.mxu0 %v134
    %157 = vmatprep.subr.bf16.mxu0 0
    %158 = vmatpush1.bf16.msra.mxu0 %v135
    %159 = vmatprep.subr.bf16.mxu0 0
    %160 = vmatpush1.bf16.msra.mxu0 %v136
    %161 = vmatprep.subr.bf16.mxu0 0
    %162 = vmatpush1.bf16.msra.mxu0 0
    %163 = vmatprep.subr.bf16.mxu0 0
    %164 = vmatpush1.bf16.msra.mxu0 0
    %165 = vmatprep.subr.bf16.mxu0 0
    %166 = vmatpush1.bf16.msra.mxu0 0
    %167 = vmatprep.subr.bf16.mxu0 0
    %168 = vmatpush1.bf16.msra.mxu0 0
    %169 = vmatprep.subr.bf16.mxu0 0
    %170 = vmatpush1.bf16.msra.mxu0 0
    %171 = vmatprep.subr.bf16.mxu0 0
    %172 = vmatpush1.bf16.msra.mxu0 0
    %173 = vmatprep.subr.bf16.mxu0 0
    %174 = vmatpush1.bf16.msra.mxu0 0
    %175 = vmatprep.subr.bf16.mxu0 0
    %176 = vmatpush1.bf16.msra.mxu0 0
    %177 = vmatprep.mubr.bf16.mxu0 0
    %178 = vmatmul.mubr.bf16.gmra.mrb[0].mxu0 %v95
    %v179 = vpop.f32.mrb[0].mxu0
    %v180 = vadd.f32 0.0, %v179
    %v181 = vpop.f32.mrb[0].mxu0
    %v182 = vpop.f32.mrb[0].mxu0
    %v183 = vadd.f32 0.0, %v182
    %v184 = vpop.f32.mrb[0].mxu0
    %185 = vdwg.mxu0
    %v186 = vmul.f32 %v180, %v180
    %v187 = vmul.f32 %v183, %v183
    %v188 = vadd.f32 %v180, %v183
    %v189 = vrot.slane %v188, 4
    %v190 = vadd.f32 %v188, %v189
    %v191 = vrot.slane %v190, 2
    %v192 = vadd.f32 %v190, %v191
    %v193 = vrot.slane %v192, 1
    %v194 = vadd.f32 %v192, %v193
    %v195 = vadd.f32 %v186, %v187
    %v196 = vrot.slane %v195, 4
    %v197 = vadd.f32 %v195, %v196
    %v198 = vrot.slane %v197, 2
    %v199 = vadd.f32 %v197, %v198
    %v200 = vrot.slane %v199, 1
    %v201 = vadd.f32 %v199, %v200
    %v202 = vmul.f32 %v194, 0.125
    %v203 = vmul.f32 %v201, 0.125
    %v204 = vmul.f32 %v202, %v202
    %v205 = vsub.f32 %v203, %v204
    %v206 = vmax.f32 %v205, 0.0
    %v207 = vld [vmem:[%s2] sm:$0x1]
    %v208 = vld [vmem:[%s2 + $0x1] sm:$0x1]
    %v209 = vadd.f32 %v206, 1e-05
    %v210 = vrsqrt.pop %v209
    %v211 = vmul.f32 %v207, %v210
    %v212 = vmul.f32 %v202, %v211
    %v213 = vsub.f32 %v208, %v212
    %v214 = vlaneseq
    %v215 = vshrl.u32 %v214, 7
    %v216 = vsub.s32 0, %v215
    %v217 = vrot.slane %v211, %v216
    %v218 = vmul.f32 %v180, %v217
    %v219 = vmul.f32 %v183, %v217
    %v220 = vlaneseq
    %v221 = vshrl.u32 %v220, 7
    %v222 = vsub.s32 0, %v221
    %v223 = vrot.slane %v213, %v222
    %v224 = vadd.f32 %v218, %v223
    %v225 = vadd.f32 %v219, %v223
    %v226 = vmax.f32 %v224, 0.0
    %v227 = vmax.f32 %v225, 0.0
    %v228 = vsel %vm71, 1, 0
    %v229 = vsel %vm72, 1, 0
    %vm230 = vcmp.eq.s32.totalorder %v228, 1
    %vm231 = vcmp.eq.s32.totalorder %v229, 1
    %v232 = vsel %vm230, %v226, 0.0
    %v233 = vsel %vm231, %v227, 0.0
    %v234 = vld [vmem:[#allocation4] sm:$0xf]
    %v235 = vld [vmem:[#allocation4 + $0x4] sm:$0xf]
    %v236 = vld [vmem:[#allocation4 + $0x8] sm:$0xf]
    %v237 = vld [vmem:[#allocation4 + $0xc] sm:$0xf]
    %v238 = vld [vmem:[#allocation4 + $0x10] sm:$0xf]
    %v239 = vld [vmem:[#allocation4 + $0x14] sm:$0xf]
    %v240 = vld [vmem:[#allocation4 + $0x18] sm:$0xf]
    %v241 = vld [vmem:[#allocation4 + $0x1c] sm:$0xf]
    %v242 = vld [vmem:[#allocation4 + $0x20] sm:$0xf]
    %v243 = vld [vmem:[#allocation4 + $0x24] sm:$0xf]
    %v244 = vld [vmem:[#allocation4 + $0x28] sm:$0xf]
    %v245 = vld [vmem:[#allocation4 + $0x2c] sm:$0xf]
    %v246 = vld [vmem:[#allocation4 + $0x30] sm:$0xf]
    %v247 = vld [vmem:[#allocation4 + $0x34] sm:$0xf]
    %v248 = vld [vmem:[#allocation4 + $0x38] sm:$0xf]
    %v249 = vld [vmem:[#allocation4 + $0x3c] sm:$0xf]
    %v250 = vpack.c.bf16 %v233, %v232
    %v267 = vunpack.c.l.b16 %v234
    %v268 = vunpack.c.l.b16 %v235
    %v269 = vunpack.c.l.b16 %v236
    %v270 = vunpack.c.l.b16 %v237
    %v271 = vunpack.c.l.b16 %v238
    %v272 = vunpack.c.l.b16 %v239
    %v273 = vunpack.c.l.b16 %v240
    %v274 = vunpack.c.l.b16 %v241
    %v275 = vunpack.c.l.b16 %v242
    %v276 = vunpack.c.l.b16 %v243
    %v277 = vunpack.c.l.b16 %v244
    %v278 = vunpack.c.l.b16 %v245
    %v279 = vunpack.c.l.b16 %v246
    %v280 = vunpack.c.l.b16 %v247
    %v281 = vunpack.c.l.b16 %v248
    %v282 = vunpack.c.l.b16 %v249
    %v283 = vpack.c.b16 %v268, %v267
    %v284 = vpack.c.b16 %v270, %v269
    %v285 = vpack.c.b16 %v272, %v271
    %v286 = vpack.c.b16 %v274, %v273
    %v287 = vpack.c.b16 %v276, %v275
    %v288 = vpack.c.b16 %v278, %v277
    %v289 = vpack.c.b16 %v280, %v279
    %v290 = vpack.c.b16 %v282, %v281
    %299 = vmatprep.subr.bf16.mxu0 0
    %300 = vmatpush1.bf16.msra.mxu0 %v283
    %301 = vmatprep.subr.bf16.mxu0 0
    %302 = vmatpush1.bf16.msra.mxu0 %v284
    %303 = vmatprep.subr.bf16.mxu0 0
    %304 = vmatpush1.bf16.msra.mxu0 %v285
    %305 = vmatprep.subr.bf16.mxu0 0
    %306 = vmatpush1.bf16.msra.mxu0 %v286
    %307 = vmatprep.subr.bf16.mxu0 0
    %308 = vmatpush1.bf16.msra.mxu0 %v287
    %309 = vmatprep.subr.bf16.mxu0 0
    %310 = vmatpush1.bf16.msra.mxu0 %v288
    %311 = vmatprep.subr.bf16.mxu0 0
    %312 = vmatpush1.bf16.msra.mxu0 %v289
    %313 = vmatprep.subr.bf16.mxu0 0
    %314 = vmatpush1.bf16.msra.mxu0 %v290
    %315 = vmatprep.subr.bf16.mxu0 0
    %316 = vmatpush1.bf16.msra.mxu0 0
    %317 = vmatprep.subr.bf16.mxu0 0
    %318 = vmatpush1.bf16.msra.mxu0 0
    %319 = vmatprep.subr.bf16.mxu0 0
    %320 = vmatpush1.bf16.msra.mxu0 0
    %321 = vmatprep.subr.bf16.mxu0 0
    %322 = vmatpush1.bf16.msra.mxu0 0
    %323 = vmatprep.subr.bf16.mxu0 0
    %324 = vmatpush1.bf16.msra.mxu0 0
    %325 = vmatprep.subr.bf16.mxu0 0
    %326 = vmatpush1.bf16.msra.mxu0 0
    %327 = vmatprep.subr.bf16.mxu0 0
    %328 = vmatpush1.bf16.msra.mxu0 0
    %329 = vmatprep.subr.bf16.mxu0 0
    %330 = vmatpush1.bf16.msra.mxu0 0
    %331 = vmatprep.mubr.bf16.mxu0 0
    %332 = vmatmul.mubr.bf16.gmra.mrb[0].mxu0 %v250
    %v333 = vpop.f32.mrb[0].mxu0
    %v334 = vadd.f32 0.0, %v333
    %v335 = vpop.f32.mrb[0].mxu0
    %v336 = vpop.f32.mrb[0].mxu0
    %v337 = vadd.f32 0.0, %v336
    %v338 = vpop.f32.mrb[0].mxu0
    %339 = vdwg.mxu0
    %v340 = vmul.f32 %v334, %v334
    %v341 = vmul.f32 %v337, %v337
    %v342 = vadd.f32 %v334, %v337
    %v343 = vrot.slane %v342, 4
    %v344 = vadd.f32 %v342, %v343
    %v345 = vrot.slane %v344, 2
    %v346 = vadd.f32 %v344, %v345
    %v347 = vrot.slane %v346, 1
    %v348 = vadd.f32 %v346, %v347
    %v349 = vadd.f32 %v340, %v341
    %v350 = vrot.slane %v349, 4
    %v351 = vadd.f32 %v349, %v350
    %v352 = vrot.slane %v351, 2
    %v353 = vadd.f32 %v351, %v352
    %v354 = vrot.slane %v353, 1
    %v355 = vadd.f32 %v353, %v354
    %v356 = vmul.f32 %v348, 0.125
    %v357 = vmul.f32 %v355, 0.125
    %v358 = vmul.f32 %v356, %v356
    %v359 = vsub.f32 %v357, %v358
    %v360 = vmax.f32 %v359, 0.0
    %v361 = vld [vmem:[%s4] sm:$0x1]
    %v362 = vld [vmem:[%s4 + $0x1] sm:$0x1]
    %v363 = vadd.f32 %v360, 1e-05
    %v364 = vrsqrt.pop %v363
    %v365 = vmul.f32 %v361, %v364
    %v366 = vmul.f32 %v356, %v365
    %v367 = vsub.f32 %v362, %v366
    %v368 = vlaneseq
    %v369 = vshrl.u32 %v368, 7
    %v370 = vsub.s32 0, %v369
    %v371 = vrot.slane %v365, %v370
    %v372 = vmul.f32 %v334, %v371
    %v373 = vmul.f32 %v337, %v371
    %v374 = vlaneseq
    %v375 = vshrl.u32 %v374, 7
    %v376 = vsub.s32 0, %v375
    %v377 = vrot.slane %v367, %v376
    %v378 = vadd.f32 %v372, %v377
    %v379 = vadd.f32 %v373, %v377
    %v380 = vmax.f32 %v378, 0.0
    %v381 = vmax.f32 %v379, 0.0
    %v382 = vsel %vm230, %v380, 0.0
    %v383 = vsel %vm231, %v381, 0.0
    %v384 = vld [vmem:[#allocation6] sm:$0xf]
    %v385 = vld [vmem:[#allocation6 + $0x4] sm:$0xf]
    %v386 = vld [vmem:[#allocation6 + $0x8] sm:$0xf]
    %v387 = vld [vmem:[#allocation6 + $0xc] sm:$0xf]
    %v388 = vld [vmem:[#allocation6 + $0x10] sm:$0xf]
    %v389 = vld [vmem:[#allocation6 + $0x14] sm:$0xf]
    %v390 = vld [vmem:[#allocation6 + $0x18] sm:$0xf]
    %v391 = vld [vmem:[#allocation6 + $0x1c] sm:$0xf]
    %v392 = vld [vmem:[#allocation6 + $0x20] sm:$0xf]
    %v393 = vld [vmem:[#allocation6 + $0x24] sm:$0xf]
    %v394 = vld [vmem:[#allocation6 + $0x28] sm:$0xf]
    %v395 = vld [vmem:[#allocation6 + $0x2c] sm:$0xf]
    %v396 = vld [vmem:[#allocation6 + $0x30] sm:$0xf]
    %v397 = vld [vmem:[#allocation6 + $0x34] sm:$0xf]
    %v398 = vld [vmem:[#allocation6 + $0x38] sm:$0xf]
    %v399 = vld [vmem:[#allocation6 + $0x3c] sm:$0xf]
    %v400 = vpack.c.bf16 %v383, %v382
    %v417 = vunpack.c.l.b16 %v384
    %v418 = vunpack.c.l.b16 %v385
    %v419 = vunpack.c.l.b16 %v386
    %v420 = vunpack.c.l.b16 %v387
    %v421 = vunpack.c.l.b16 %v388
    %v422 = vunpack.c.l.b16 %v389
    %v423 = vunpack.c.l.b16 %v390
    %v424 = vunpack.c.l.b16 %v391
    %v425 = vunpack.c.l.b16 %v392
    %v426 = vunpack.c.l.b16 %v393
    %v427 = vunpack.c.l.b16 %v394
    %v428 = vunpack.c.l.b16 %v395
    %v429 = vunpack.c.l.b16 %v396
    %v430 = vunpack.c.l.b16 %v397
    %v431 = vunpack.c.l.b16 %v398
    %v432 = vunpack.c.l.b16 %v399
    %v433 = vpack.c.b16 %v418, %v417
    %v434 = vpack.c.b16 %v420, %v419
    %v435 = vpack.c.b16 %v422, %v421
    %v436 = vpack.c.b16 %v424, %v423
    %v437 = vpack.c.b16 %v426, %v425
    %v438 = vpack.c.b16 %v428, %v427
    %v439 = vpack.c.b16 %v430, %v429
    %v440 = vpack.c.b16 %v432, %v431
    %449 = vmatprep.subr.bf16.mxu0 0
    %450 = vmatpush1.bf16.msra.mxu0 %v433
    %451 = vmatprep.subr.bf16.mxu0 0
    %452 = vmatpush1.bf16.msra.mxu0 %v434
    %453 = vmatprep.subr.bf16.mxu0 0
    %454 = vmatpush1.bf16.msra.mxu0 %v435
    %455 = vmatprep.subr.bf16.mxu0 0
    %456 = vmatpush1.bf16.msra.mxu0 %v436
    %457 = vmatprep.subr.bf16.mxu0 0
    %458 = vmatpush1.bf16.msra.mxu0 %v437
    %459 = vmatprep.subr.bf16.mxu0 0
    %460 = vmatpush1.bf16.msra.mxu0 %v438
    %461 = vmatprep.subr.bf16.mxu0 0
    %462 = vmatpush1.bf16.msra.mxu0 %v439
    %463 = vmatprep.subr.bf16.mxu0 0
    %464 = vmatpush1.bf16.msra.mxu0 %v440
    %465 = vmatprep.subr.bf16.mxu0 0
    %466 = vmatpush1.bf16.msra.mxu0 0
    %467 = vmatprep.subr.bf16.mxu0 0
    %468 = vmatpush1.bf16.msra.mxu0 0
    %469 = vmatprep.subr.bf16.mxu0 0
    %470 = vmatpush1.bf16.msra.mxu0 0
    %471 = vmatprep.subr.bf16.mxu0 0
    %472 = vmatpush1.bf16.msra.mxu0 0
    %473 = vmatprep.subr.bf16.mxu0 0
    %474 = vmatpush1.bf16.msra.mxu0 0
    %475 = vmatprep.subr.bf16.mxu0 0
    %476 = vmatpush1.bf16.msra.mxu0 0
    %477 = vmatprep.subr.bf16.mxu0 0
    %478 = vmatpush1.bf16.msra.mxu0 0
    %479 = vmatprep.subr.bf16.mxu0 0
    %480 = vmatpush1.bf16.msra.mxu0 0
    %481 = vmatprep.mubr.bf16.mxu0 0
    %482 = vmatmul.mubr.bf16.gmra.mrb[0].mxu0 %v400
    %v483 = vpop.f32.mrb[0].mxu0
    %v484 = vadd.f32 0.0, %v483
    %v485 = vpop.f32.mrb[0].mxu0
    %v486 = vpop.f32.mrb[0].mxu0
    %v487 = vadd.f32 0.0, %v486
    %v488 = vpop.f32.mrb[0].mxu0
    %489 = vdwg.mxu0
    %v490 = vmul.f32 %v484, %v484
    %v491 = vmul.f32 %v487, %v487
    %v492 = vadd.f32 %v484, %v487
    %v493 = vrot.slane %v492, 4
    %v494 = vadd.f32 %v492, %v493
    %v495 = vrot.slane %v494, 2
    %v496 = vadd.f32 %v494, %v495
    %v497 = vrot.slane %v496, 1
    %v498 = vadd.f32 %v496, %v497
    %v499 = vadd.f32 %v490, %v491
    %v500 = vrot.slane %v499, 4
    %v501 = vadd.f32 %v499, %v500
    %v502 = vrot.slane %v501, 2
    %v503 = vadd.f32 %v501, %v502
    %v504 = vrot.slane %v503, 1
    %v505 = vadd.f32 %v503, %v504
    %v506 = vmul.f32 %v498, 0.125
    %v507 = vmul.f32 %v505, 0.125
    %v508 = vmul.f32 %v506, %v506
    %v509 = vsub.f32 %v507, %v508
    %v510 = vmax.f32 %v509, 0.0
    %v511 = vld [vmem:[%s6] sm:$0x1]
    %v512 = vld [vmem:[%s6 + $0x1] sm:$0x1]
    %v513 = vadd.f32 %v510, 1e-05
    %v514 = vrsqrt.pop %v513
    %v515 = vmul.f32 %v511, %v514
    %v516 = vmul.f32 %v506, %v515
    %v517 = vsub.f32 %v512, %v516
    %v518 = vlaneseq
    %v519 = vshrl.u32 %v518, 7
    %v520 = vsub.s32 0, %v519
    %v521 = vrot.slane %v515, %v520
    %v522 = vmul.f32 %v484, %v521
    %v523 = vmul.f32 %v487, %v521
    %v524 = vlaneseq
    %v525 = vshrl.u32 %v524, 7
    %v526 = vsub.s32 0, %v525
    %v527 = vrot.slane %v517, %v526
    %v528 = vadd.f32 %v522, %v527
    %v529 = vadd.f32 %v523, %v527
    %v530 = vmax.f32 %v528, 0.0
    %v531 = vmax.f32 %v529, 0.0
    %532 = vst [vmem:[%s7] sm:$0xff] %v530
    %533 = vst [vmem:[%s7 + $0x8] sm:$0xff] %v531
    // Predicated region
    $region42: #{generator_forward.1} parent=1 // pred_check
      _
    $region43: #{generator_forward.1} parent=1 // pred_check_branch
      %535 = sbr.rel (0) target = $region45
    $region44: #{generator_forward.1} parent=1 // pred_region
      _
    $region45: #{generator_forward.1} parent=1 // pred_fallthru
      _
    // Predicated region
    $region46: #{generator_forward.1} parent=1 // pred_check
      _
    $region47: #{generator_forward.1} parent=1 // pred_check_branch
      %537 = sbr.rel (0) target = $region49
    $region48: #{generator_forward.1} parent=1 // pred_region
      _
    $region49: #{generator_forward.1} parent=1 // pred_fallthru
      _
    %538 = vsyncpa [#allocation3], 1
    %539 = vsyncpa [#allocation5], 1

</llo_original>
